<compile_context>
chip_gen: v7x
topology: tpu7x:2x2x1
jax: 0.10.0
libtpu: 0.0.40
codegen_flags: <defaults>
</compile_context>

<pallas_src>
import math

import jax
import jax.numpy as jnp
from jax.experimental import pallas as pl
from jax.experimental.pallas import tpu as pltpu


# ----------------------------------------------------------------------------
# Kernels (module level so pallas_call params stay cache-friendly).
# ----------------------------------------------------------------------------


def _glow_loss_resident_kernel(c_ref, logp_ref, logdet_ref, out_ref):
    """Single-invocation path: both inputs fully resident in VMEM."""
    s = jnp.sum(logp_ref[...] + logdet_ref[...])
    # Scalar epilogue: out = |c0 + c1 * sum|
    out_ref[0, 0] = jnp.abs(c_ref[0] + c_ref[1] * s)


def _glow_loss_tiled_kernel(c_ref, logp_ref, logdet_ref, out_ref, acc_ref):
    """Streaming path for very large batches.

    Per step: pure VPU elementwise adds into a block-shaped VMEM accumulator
    (hidden under the input DMA).  Cross-lane reduce + scale + abs only once
    in the epilogue.  Zero-padded tails are sum-neutral because the constant
    term is folded into c0 on the host.
    """
    i = pl.program_id(0)

    @pl.when(i == 0)
    def _():
        acc_ref[...] = jnp.zeros_like(acc_ref)

    acc_ref[...] += logp_ref[...] + logdet_ref[...]

    @pl.when(i == pl.num_programs(0) - 1)
    def _():
        out_ref[0, 0] = jnp.abs(c_ref[0] + c_ref[1] * jnp.sum(acc_ref[...]))


def _lane_block_map(i):
    return (0, i)


# ----------------------------------------------------------------------------
# Wrapper
# ----------------------------------------------------------------------------


def glow_loss(log_p, logdet, n_pixel, n_bins, *,
              lane_block=32 * 1024,
              max_resident_bytes=8 * 1024 * 1024):
    """Pallas implementation of GlowLoss.forward.

    Args:
      log_p:  f32[B]  per-sample log-likelihood term.
      logdet: f32[B]  per-sample log-determinant term.
      n_pixel, n_bins: Python scalars (static Glow hyper-params).
      lane_block: lane width of each tiled reduction block (multiple of 128).
        Default 32768 -> 1 MiB/input/step (good for v7x; fine on v6e/v5e).
      max_resident_bytes: if the combined input payload (2*B*4 bytes) is at or
        below this, run the grid-less fully-resident fast path.

    Returns:
      (loss_scalar, output_dict) mirroring the PyTorch module's semantics.
    """
    log_p = jnp.asarray(log_p, jnp.float32).reshape(-1)
    logdet = jnp.asarray(logdet, jnp.float32).reshape(-1)
    if log_p.shape != logdet.shape:
        raise ValueError("log_p and logdet must have the same shape")
    b = log_p.shape[0]
    if b == 0:
        raise ValueError("GlowLoss: mean over an empty batch is undefined (B=0)")
    if lane_block <= 0 or lane_block % 128 != 0:
        raise ValueError("lane_block must be a positive multiple of 128")

    # Fold every scalar into two constants (computed in Python float64),
    # passed as runtime SMEM data so n_pixel / n_bins changes do not recompile.
    c0 = math.log(float(n_bins)) / math.log(2.0)
    c1 = -1.0 / (math.log(2.0) * float(n_pixel) * float(b))
    c = jnp.array([c0, c1], dtype=jnp.float32)

    if 2 * b * 4 <= max_resident_bytes:
        # ------------------------------------------------------------------
        # Fast path (typical loss sizes): no grid, no host-side data movement.
        # ------------------------------------------------------------------
        out = pl.pallas_call(
            _glow_loss_resident_kernel,
            out_shape=jax.ShapeDtypeStruct((1, 1), jnp.float32),
            in_specs=[
                pl.BlockSpec(memory_space=pltpu.MemorySpace.SMEM),   # c0, c1
                pl.BlockSpec(memory_space=pltpu.MemorySpace.VMEM),   # log_p
                pl.BlockSpec(memory_space=pltpu.MemorySpace.VMEM),   # logdet
            ],
            out_specs=pl.BlockSpec(memory_space=pltpu.MemorySpace.SMEM),
        )(c, log_p.reshape(1, b), logdet.reshape(1, b))
    else:
        # ------------------------------------------------------------------
        # Huge-batch path: tiled streaming reduce.  Each input is zero-padded
        # to a whole number of (8, lane_block) blocks (sum-neutral since the
        # constant term lives in c0) and streamed through a 1-D grid.
        # ------------------------------------------------------------------
        sublanes = 8
        per_block = sublanes * lane_block
        n_blocks = pl.cdiv(b, per_block)
        padded = n_blocks * per_block
        lanes = n_blocks * lane_block
        pad = padded - b
        logp2 = jnp.pad(log_p, (0, pad)).reshape(sublanes, lanes)
        logdet2 = jnp.pad(logdet, (0, pad)).reshape(sublanes, lanes)

        out = pl.pallas_call(
            _glow_loss_tiled_kernel,
            out_shape=jax.ShapeDtypeStruct((1, 1), jnp.float32),
            grid=(n_blocks,),
            in_specs=[
                pl.BlockSpec(memory_space=pltpu.MemorySpace.SMEM),   # c0, c1
                pl.BlockSpec((sublanes, lane_block), _lane_block_map),
                pl.BlockSpec((sublanes, lane_block), _lane_block_map),
            ],
            out_specs=pl.BlockSpec(memory_space=pltpu.MemorySpace.SMEM),
            scratch_shapes=[pltpu.VMEM((sublanes, lane_block), jnp.float32)],
            # Must stay "arbitrary": the running accumulator is only correct
            # if the reduction axis is executed sequentially on one core.
            compiler_params=pltpu.CompilerParams(
                dimension_semantics=("arbitrary",)),
        )(c, logp2, logdet2)

    loss = out[0, 0]

    # Mirror the module's output_dict side-effect functionally.
    output_dict = {"others": {"offset_loss": loss}}
    return loss, output_dict


def glow_loss_ref(log_p, logdet, n_pixel, n_bins):
    """Pure-JAX reference for verification."""
    loss = -math.log(n_bins) * n_pixel
    loss = loss + logdet + log_p
    return jnp.abs(((-loss) / (math.log(2.0) * n_pixel)).mean())


if __name__ == "__main__":
    # TODO(synk): self.w_lovasz = cfg.TRAINING.LOSSES.WEIGHT_OFFSET is defined in
    # __init__ but never used in forward(); intentionally not modeled.
    key = jax.random.PRNGKey(0)
    k1, k2, k3, k4, k5, k6 = jax.random.split(key, 6)

    n_pixel = 16 * 16 * 4   # e.g. H*W*C of a small Glow input
    n_bins = 256.0          # 8-bit quantization

    # Case 1: typical tiny batch -> grid-less fully-resident fast path.
    B = 8
    log_p = jax.random.normal(k1, (B,), jnp.float32) * 100.0 - 3000.0
    logdet = jax.random.normal(k2, (B,), jnp.float32) * 50.0 + 500.0
    loss, out_dict = glow_loss(log_p, logdet, n_pixel, n_bins)
    loss = jax.block_until_ready(loss)
    ref = glow_loss_ref(log_p, logdet, n_pixel, n_bins)
    assert jnp.allclose(loss, ref, rtol=1e-5, atol=1e-5), (loss, ref)
    assert jnp.allclose(out_dict["others"]["offset_loss"], ref, rtol=1e-5, atol=1e-5)

    # Case 2: force the tiled streaming path (grid=4), divisible batch.
    B2 = 4096
    log_p2 = jax.random.normal(k3, (B2,), jnp.float32) * 100.0 - 3000.0
    logdet2 = jax.random.normal(k4, (B2,), jnp.float32) * 50.0 + 500.0
    loss2, _ = glow_loss(log_p2, logdet2, n_pixel, n_bins,
                         lane_block=128, max_resident_bytes=0)
    loss2 = jax.block_until_ready(loss2)
    ref2 = glow_loss_ref(log_p2, logdet2, n_pixel, n_bins)
    assert jnp.allclose(loss2, ref2, rtol=1e-4, atol=1e-4), (loss2, ref2)

    # Case 3: tiled path with a ragged tail (exercises the zero-pad branch).
    B3 = 3000
    log_p3 = jax.random.normal(k5, (B3,), jnp.float32) * 100.0 - 3000.0
    logdet3 = jax.random.normal(k6, (B3,), jnp.float32) * 50.0 + 500.0
    loss3, _ = glow_loss(log_p3, logdet3, n_pixel, n_bins,
                         lane_block=128, max_resident_bytes=0)
    loss3 = jax.block_until_ready(loss3)
    ref3 = glow_loss_ref(log_p3, logdet3, n_pixel, n_bins)
    assert jnp.allclose(loss3, ref3, rtol=1e-4, atol=1e-4), (loss3, ref3)

    print("KERNEL_OK")
</pallas_src>

<mosaic_0001>
module attributes {stable_mosaic.version = 11 : i64} {
  func.func @_glow_loss_resident_kernel(%arg0: memref<2xf32, #tpu.memory_space<smem>>, %arg1: memref<1x8xf32, #tpu.memory_space<vmem>>, %arg2: memref<1x8xf32, #tpu.memory_space<vmem>>, %arg3: memref<1x1xf32, #tpu.memory_space<smem>>) attributes {dimension_semantics = [], scalar_prefetch = 0 : i64, scratch_operands = 0 : i64, tpu.core_type = #tpu.core_type<tc>} {
    %c0 = arith.constant 0 : index
    %c0_0 = arith.constant 0 : index
    %0 = vector.load %arg1[%c0, %c0_0] : memref<1x8xf32, #tpu.memory_space<vmem>>, vector<1x8xf32>
    %c0_1 = arith.constant 0 : index
    %c0_2 = arith.constant 0 : index
    %1 = vector.load %arg2[%c0_1, %c0_2] : memref<1x8xf32, #tpu.memory_space<vmem>>, vector<1x8xf32>
    %2 = arith.addf %0, %1 : vector<1x8xf32>
    %3 = vector.shape_cast %2 : vector<1x8xf32> to vector<1x1x8xf32>
    %cst = arith.constant dense<0.000000e+00> : vector<1xf32>
    %4 = vector.multi_reduction <add>, %3, %cst [1, 2] : vector<1x1x8xf32> to vector<1xf32>
    %5 = vector.shape_cast %4 : vector<1xf32> to vector<1x1x1xf32>
    %6 = vector.extract %5[0, 0, 0] : f32 from vector<1x1x1xf32>
    %c0_3 = arith.constant 0 : index
    %7 = memref.load %arg0[%c0_3] : memref<2xf32, #tpu.memory_space<smem>>
    %c1 = arith.constant 1 : index
    %8 = memref.load %arg0[%c1] : memref<2xf32, #tpu.memory_space<smem>>
    %9 = arith.mulf %8, %6 : f32
    %10 = arith.addf %7, %9 : f32
    %11 = math.absf %10 : f32
    %c0_4 = arith.constant 0 : index
    %c0_5 = arith.constant 0 : index
    %12 = memref.load %arg3[%c0_4, %c0_5] : memref<1x1xf32, #tpu.memory_space<smem>>
    memref.store %11, %arg3[%c0_4, %c0_5] : memref<1x1xf32, #tpu.memory_space<smem>>
    return
  }
}

</mosaic_0001>

<llo_original>
// kernel: tpu_custom_call.1
$region0: #{tpu_custom_call.1}
  #allocation0 [shape = 'u32[]', space=smem, size = 0x4, offset = 0x4, fixed_abs, tag = 'smem constant byte address 0x4 - core index']
  #allocation1 [shape = 'u32[144,128]{1,0:T(1,128)}', space=vmem, size = 0x12000, scoped, tag = 'internal scratch']
  %s0 = inlined_call_operand.hbm [shape: f32[2], index: 0, kind: input, shape index: {}]
  %s1 = inlined_call_operand.vmem [shape: f32[1,8], index: 1, kind: input, shape index: {}]
  %s2 = inlined_call_operand.vmem [shape: f32[1,8], index: 2, kind: input, shape index: {}]
  %s3 = inlined_call_operand.hbm [shape: f32[1,1], index: 3, kind: output, shape index: {}]
  %s4 = sld [smem:[#allocation0]]
  $region26: #{tpu_custom_call.1} parent=0
    _
  %s6 = ssub.s32 1, %s4
  %s7 = scalar_select 0, %s6, %s4
  $region1: #{tpu_custom_call.1} parent=0
    #allocation2 [shape = 'u8[512]{0}', space=smem, size = 0x200, scoped, tag = 'input window, operand 0, single buffered']
    #allocation3 [shape = 's32[1]{0}', space=sflag, size = 0x4, scoped, tag = 'scoped memory for tpu_custom_call.1']
    #allocation4 [shape = 's32[1]{0}', space=sflag, size = 0x4, scoped, tag = 'scoped memory for tpu_custom_call.1']
    #allocation5 [shape = 'u8[512]{0}', space=smem, size = 0x200, scoped, tag = 'output window, operand 0, single buffered']
    %8 = vsyncpa [#allocation3], 0
    %9 = vsyncpa [#allocation4], 0
    // Predicated region
    $region2: #{tpu_custom_call.1} parent=1 // pred_check
      _
    $region3: #{tpu_custom_call.1} parent=1 // pred_check_branch
      %11 = sbr.rel (0) target = $region5
    $region4: #{tpu_custom_call.1} parent=1 // pred_region
      %s13 = ssub.s32 16, 16
      %14 = vsyncadd [#allocation3], %s13
      %17 = dma.hbm_to_smem %s0, 16, [#allocation2], [#allocation3]
    $region5: #{tpu_custom_call.1} parent=1 // pred_fallthru
      _
    // Predicated region
    $region6: #{tpu_custom_call.1} parent=1 // pred_check
      _
    $region7: #{tpu_custom_call.1} parent=1 // pred_check_branch
      %19 = sbr.rel (0) target = $region9
    $region8: #{tpu_custom_call.1} parent=1 // pred_region
      _
    $region9: #{tpu_custom_call.1} parent=1 // pred_fallthru
      _
    // Predicated region
    $region10: #{tpu_custom_call.1} parent=1 // pred_check
      _
    $region11: #{tpu_custom_call.1} parent=1 // pred_check_branch
      %21 = sbr.rel (0) target = $region13
    $region12: #{tpu_custom_call.1} parent=1 // pred_region
      _
    $region13: #{tpu_custom_call.1} parent=1 // pred_fallthru
      _
    // Predicated region
    $region14: #{tpu_custom_call.1} parent=1 // pred_check
      _
    $region15: #{tpu_custom_call.1} parent=1 // pred_check_branch
      %23 = sbr.rel (0) target = $region17
    $region16: #{tpu_custom_call.1} parent=1 // pred_region
      %24 = dma.done [#allocation3], 16
    $region17: #{tpu_custom_call.1} parent=1 // pred_fallthru
      _
    %25 = sfence
    %v26 = vld [vmem:[%s1] sm:$0x1]
    %v27 = vld [vmem:[%s2] sm:$0x1]
    %v28 = vadd.f32 %v26, %v27
    %vm29 = vcmask 57344
    %v30 = vsel %vm29, %v28, 0.0
    %31 = vadd.xlane.f32.xlu0 %v30
    %v32 = vpop.xlane.xlu0 %31
    %v33 = vrot.slane %v32, 4
    %v34 = vadd.f32 %v32, %v33
    %v35 = vrot.slane %v34, 2
    %v36 = vadd.f32 %v34, %v35
    %v37 = vrot.slane %v36, 1
    %v38 = vadd.f32 %v36, %v37
    %s39 = vtos %v38
    %s40 = sld [smem:[#allocation2]]
    %s41 = sld [smem:[#allocation2 + $0x1]]
    %s42 = smul.f32 %s41, %s39
    %s43 = sadd.f32 %s40, %s42
    %s44 = sand.u32 2147483647, %s43
    %s45 = scalar_lea.smem [#allocation5], 0
    %46 = sst [smem:[%s45]] %s44
    // Predicated region
    $region18: #{tpu_custom_call.1} parent=1 // pred_check
      _
    $region19: #{tpu_custom_call.1} parent=1 // pred_check_branch
      %48 = sbr.rel (0) target = $region21
    $region20: #{tpu_custom_call.1} parent=1 // pred_region
      %s50 = ssub.s32 16, 16
      %51 = vsyncadd [#allocation4], %s50
      %54 = dma.smem_to_hbm [#allocation5], 16, %s3, [#allocation4]
    $region21: #{tpu_custom_call.1} parent=1 // pred_fallthru
      _
    // Predicated region
    $region22: #{tpu_custom_call.1} parent=1 // pred_check
      _
    $region23: #{tpu_custom_call.1} parent=1 // pred_check_branch
      %56 = sbr.rel (0) target = $region25
    $region24: #{tpu_custom_call.1} parent=1 // pred_region
      %57 = dma.done [#allocation4], 16
    $region25: #{tpu_custom_call.1} parent=1 // pred_fallthru
      _
    %58 = sfence
    %59 = vsyncpa [#allocation3], 1
    %60 = vsyncpa [#allocation4], 1

</llo_original>
